<compile_context>
chip_gen: v6e
topology: v6e:2x2x1
jax: 0.10.0
libtpu: 0.0.40
codegen_flags: <defaults>
</compile_context>

<pallas_src>
import functools

import jax
import jax.numpy as jnp
import numpy as np
from jax import lax
from jax.experimental import pallas as pl
from jax.experimental.pallas import tpu as pltpu

# Matmul-operand dtype (weights + taps).  f32 keeps exact-ish parity with the
# reference; set to jnp.bfloat16 on v6e/v7x for ~2x MXU throughput / half VMEM.
_COMPUTE_DTYPE = jnp.float32

_TAPS = tuple((dy, dx) for dy in (-1, 0, 1) for dx in (-1, 0, 1))


# ----------------------------------------------------------------------------
# pltpu.roll convention probe (runs one tiny kernel, cached).
# ----------------------------------------------------------------------------
@functools.cache
def _roll_is_np_roll():
    """True iff pltpu.roll(x, +1, axis) moves element i to index i+1 (np.roll)."""
    def k(x_ref, o_ref):
        o_ref[...] = pltpu.roll(x_ref[...], 1, 1)

    x = jnp.broadcast_to(jnp.arange(128.0, dtype=jnp.float32), (8, 128))
    y = pl.pallas_call(k, out_shape=jax.ShapeDtypeStruct((8, 128), jnp.float32))(x)
    return bool(np.asarray(y)[0, 1] == 0.0)


def _gather_shift(off, length):
    """Static roll amount such that rolled[p] == src[(p + off) % length]."""
    return (-off) % length if _roll_is_np_roll() else off % length


# ----------------------------------------------------------------------------
# Layout helpers: NCHW <-> lane-dense (G, C, L) with spatial (and, for small
# maps, batch) folded into the 128-wide lane dimension.
# ----------------------------------------------------------------------------
def _should_fold(N, HW):
    return HW < 128 and N > 1


def _lane_layout(x, folded):
    N, C, H, W = x.shape
    HW = H * W
    if not folded:
        return x.reshape(N, C, HW)
    return jnp.transpose(x.reshape(N, C, HW), (1, 0, 2)).reshape(1, C, N * HW)


def _from_lane_layout(y, folded, N, C, H, W):
    HW = H * W
    if not folded:
        return y.reshape(N, C, H, W)
    return jnp.transpose(y.reshape(C, N, HW), (1, 0, 2)).reshape(N, C, H, W)


def _build_tap_masks(H, W, L):
    """(9, L) border-validity masks (tap order = _TAPS), periodic per image."""
    HW = H * W
    q = np.arange(HW)
    y, x = q // W, q % W
    row = {-1: y > 0, 0: np.ones(HW, bool), 1: y < H - 1}
    col = {-1: x > 0, 0: np.ones(HW, bool), 1: x < W - 1}
    m = np.stack([(row[dy] & col[dx]).astype(np.float32) for dy, dx in _TAPS])
    return jnp.asarray(np.tile(m, (1, L // HW)))


# ----------------------------------------------------------------------------
# Fused kernel: 3x3 conv (bias-free) + training-mode BatchNorm statistics.
# Inputs may carry a deferred (scale, shift) + ReLU from the producing layer.
# ----------------------------------------------------------------------------
def _make_conv3x3_bn_kernel(*, num_inputs, pending, shifts, eps, count):
    def kernel(*refs):
        idx = 0
        x_refs = refs[idx:idx + num_inputs]; idx += num_inputs
        w_refs = refs[idx:idx + num_inputs]; idx += num_inputs
        sc_refs, sh_refs = [], []
        for i in range(num_inputs):
            if pending[i]:
                sc_refs.append(refs[idx]); sh_refs.append(refs[idx + 1]); idx += 2
            else:
                sc_refs.append(None); sh_refs.append(None)
        g_ref, be_ref, m_ref = refs[idx], refs[idx + 1], refs[idx + 2]; idx += 3
        out_ref, scale_out_ref, shift_out_ref = refs[idx], refs[idx + 1], refs[idx + 2]
        idx += 3
        s_ref, ss_ref = refs[idx], refs[idx + 1]; idx += 2
        xn_refs = []
        for i in range(num_inputs):
            if pending[i]:
                xn_refs.append(refs[idx]); idx += 1
            else:
                xn_refs.append(None)

        step = pl.program_id(0)

        @pl.when(step == 0)
        def _():
            s_ref[...] = jnp.zeros_like(s_ref)
            ss_ref[...] = jnp.zeros_like(ss_ref)

        # Apply the producer's deferred BN scale/shift + ReLU ONCE per block,
        # into a VMEM scratch the tap rolls read from (f32 VPU work).
        srcs = []
        for i in range(num_inputs):
            if pending[i]:
                xn_refs[i][...] = jnp.maximum(
                    x_refs[i][0] * sc_refs[i][...] + sh_refs[i][...], 0.0)
                srcs.append(xn_refs[i][...])
            else:
                srcs.append(x_refs[i][0])

        # 3x3 conv: 9 lane-rolled taps per input, each a small-K MXU dot,
        # accumulated in f32.  No im2col buffer, no lane-misaligned loads.
        acc = None
        for i in range(num_inputs):
            src = srcs[i]
            w_i = w_refs[i]                                   # (9, Cout, Cin_i)
            for k, (dy, dx) in enumerate(_TAPS):
                if (dy, dx) == (0, 0):
                    tap = src
                else:
                    tap = pltpu.roll(src, shift=shifts[k], axis=1)
                    tap = tap * m_ref[k:k + 1, :]             # zero-padding mask
                contrib = jnp.dot(w_i[k], tap.astype(_COMPUTE_DTYPE),
                                  preferred_element_type=jnp.float32)
                acc = contrib if acc is None else acc + contrib

        out_ref[0] = acc                                      # raw conv output

        # Per-channel BN sums accumulated across the (arbitrary) batch axis.
        s_ref[...] += jnp.sum(acc, axis=1, keepdims=True)
        ss_ref[...] += jnp.sum(acc * acc, axis=1, keepdims=True)

        @pl.when(step == pl.num_programs(0) - 1)
        def _():
            inv = 1.0 / count
            mean = s_ref[...] * inv
            var = jnp.maximum(ss_ref[...] * inv - mean * mean, 0.0)
            scale = g_ref[...] * lax.rsqrt(var + eps)
            scale_out_ref[...] = scale
            shift_out_ref[...] = be_ref[...] - mean * scale

    return kernel


def _fused_conv3x3_bn(inputs, w_oihw, gamma, beta, eps=1e-5):
    """Fused Conv2d(3x3, pad=1) + training-mode BatchNorm statistics.

    `inputs` is a list of (x_nchw, scale, shift); scale/shift (C,1) are the
    producer's deferred BN affine (None => already-final activation, e.g. an
    encoder skip).  The conv bias is dropped (cancelled exactly by the
    batch-mean subtraction).  Returns (raw_out_nchw, scale_out, shift_out):
    the consumer must apply relu(x*scale + shift).
    """
    N, _, H, W = inputs[0][0].shape
    HW = H * W
    cout = w_oihw.shape[0]
    cins = [x.shape[1] for x, _, _ in inputs]
    assert sum(cins) == w_oihw.shape[1]

    folded = _should_fold(N, HW)
    G = 1 if folded else N
    L = N * HW if folded else HW
    assert L % 128 == 0, "lane extent must be a multiple of 128 at these shapes"
    count = float(G * L)                     # == N * H * W

    x_lanes = [_lane_layout(x, folded) for x, _, _ in inputs]

    # OIHW weight split along Cin per input, reordered to (9, Cout, Cin_i);
    # tap k = (dy+1)*3 + (dx+1) pairs with w[:, :, dy+1, dx+1].
    w_parts, off = [], 0
    for c in cins:
        wp = jnp.transpose(w_oihw[:, off:off + c], (2, 3, 0, 1)).reshape(9, cout, c)
        w_parts.append(wp.astype(_COMPUTE_DTYPE))
        off += c

    masks = _build_tap_masks(H, W, L)
    shifts = tuple(_gather_shift(dy * W + dx, L) for dy, dx in _TAPS)
    pending = tuple(s is not None for _, s, _ in inputs)

    args, in_specs = [], []
    for xl, c in zip(x_lanes, cins):
        args.append(xl)
        in_specs.append(pl.BlockSpec((1, c, L), lambda n: (n, 0, 0)))
    for wp, c in zip(w_parts, cins):
        args.append(wp)
        in_specs.append(pl.BlockSpec((9, cout, c), lambda n: (0, 0, 0)))
    for (_, s, h), c in zip(inputs, cins):
        if s is not None:
            args += [s, h]
            in_specs += [pl.BlockSpec((c, 1), lambda n: (0, 0)),
                         pl.BlockSpec((c, 1), lambda n: (0, 0))]
    args += [gamma.reshape(cout, 1), beta.reshape(cout, 1), masks]
    in_specs += [pl.BlockSpec((cout, 1), lambda n: (0, 0)),
                 pl.BlockSpec((cout, 1), lambda n: (0, 0)),
                 pl.BlockSpec((9, L), lambda n: (0, 0))]

    scratch = [pltpu.VMEM((cout, 1), jnp.float32),
               pltpu.VMEM((cout, 1), jnp.float32)]
    for c, p in zip(cins, pending):
        if p:
            scratch.append(pltpu.VMEM((c, L), jnp.float32))

    kernel = _make_conv3x3_bn_kernel(
        num_inputs=len(inputs), pending=pending, shifts=shifts,
        eps=eps, count=count)

    raw, scale, shift = pl.pallas_call(
        kernel,
        out_shape=(jax.ShapeDtypeStruct((G, cout, L), jnp.float32),
                   jax.ShapeDtypeStruct((cout, 1), jnp.float32),
                   jax.ShapeDtypeStruct((cout, 1), jnp.float32)),
        grid=(G,),
        in_specs=in_specs,
        out_specs=(pl.BlockSpec((1, cout, L), lambda n: (n, 0, 0)),
                   pl.BlockSpec((cout, 1), lambda n: (0, 0)),
                   pl.BlockSpec((cout, 1), lambda n: (0, 0))),
        scratch_shapes=scratch,
        compiler_params=pltpu.CompilerParams(
            # BN sums accumulate across the batch axis -> 'arbitrary'.
            # TODO(synk): per-core partial stats + 'parallel' for v7x megacore.
            dimension_semantics=("arbitrary",)),
    )(*args)

    return _from_lane_layout(raw, folded, N, cout, H, W), scale, shift


# ----------------------------------------------------------------------------
# Final 1x1 conv (+bias) + channel softmax, applying the last deferred BN+ReLU.
# ----------------------------------------------------------------------------
def _conv1x1_softmax_kernel(x_ref, sc_ref, sh_ref, w_ref, b_ref, o_ref):
    xn = jnp.maximum(x_ref[0] * sc_ref[...] + sh_ref[...], 0.0)
    logits = jnp.dot(w_ref[...], xn.astype(_COMPUTE_DTYPE),
                     preferred_element_type=jnp.float32) + b_ref[...]
    m = jnp.max(logits, axis=0, keepdims=True)
    e = jnp.exp(logits - m)
    o_ref[0] = e / jnp.sum(e, axis=0, keepdims=True)


def _conv1x1_softmax(x_raw, scale, shift, w_oihw, b):
    N, Cin, H, W = x_raw.shape
    HW = H * W
    cout = w_oihw.shape[0]
    folded = _should_fold(N, HW)
    G = 1 if folded else N
    L = N * HW if folded else HW
    xl = _lane_layout(x_raw, folded)
    out = pl.pallas_call(
        _conv1x1_softmax_kernel,
        out_shape=jax.ShapeDtypeStruct((G, cout, L), jnp.float32),
        grid=(G,),
        in_specs=[pl.BlockSpec((1, Cin, L), lambda n: (n, 0, 0)),
                  pl.BlockSpec((Cin, 1), lambda n: (0, 0)),
                  pl.BlockSpec((Cin, 1), lambda n: (0, 0)),
                  pl.BlockSpec((cout, Cin), lambda n: (0, 0)),
                  pl.BlockSpec((cout, 1), lambda n: (0, 0))],
        out_specs=pl.BlockSpec((1, cout, L), lambda n: (n, 0, 0)),
        compiler_params=pltpu.CompilerParams(
            dimension_semantics=("parallel",)),
    )(xl, scale, shift, w_oihw.reshape(cout, Cin).astype(_COMPUTE_DTYPE),
      b.reshape(cout, 1))
    return _from_lane_layout(out, folded, N, cout, H, W)


# ----------------------------------------------------------------------------
# Decoder orchestration (NCHW in / NCHW out, PyTorch-style params).
# ----------------------------------------------------------------------------
def _up_stage(x_raw, scale, shift, p):
    # TODO(synk): fuse the nearest-neighbor 2x upsample into the conv kernel's
    # tap construction instead of materializing the 4x tensor via jnp.repeat.
    x_up = jnp.repeat(jnp.repeat(x_raw, 2, axis=2), 2, axis=3)
    return _fused_conv3x3_bn([(x_up, scale, shift)], p["w"], p["g"], p["be"])


def _conv_block_stage(skip, up_raw, up_scale, up_shift, p):
    # Skip concat fused: two activation inputs, weight split along Cin
    # (PyTorch concat order is (skip, up)).
    r, s, h = _fused_conv3x3_bn(
        [(skip, None, None), (up_raw, up_scale, up_shift)],
        p["w1"], p["g1"], p["be1"])
    return _fused_conv3x3_bn([(r, s, h)], p["w2"], p["g2"], p["be2"])


def unet2d_decoder_forward(e, params):
    d, s, h = _up_stage(e[4], None, None, params["Up5"])
    d, s, h = _conv_block_stage(e[3], d, s, h, params["Up_conv5"])
    d, s, h = _up_stage(d, s, h, params["Up4"])
    d, s, h = _conv_block_stage(e[2], d, s, h, params["Up_conv4"])
    d, s, h = _up_stage(d, s, h, params["Up3"])
    d, s, h = _conv_block_stage(e[1], d, s, h, params["Up_conv3"])
    d, s, h = _up_stage(d, s, h, params["Up2"])
    d, s, h = _conv_block_stage(e[0], d, s, h, params["Up_conv2"])
    return _conv1x1_softmax(d, s, h, params["Conv"]["w"], params["Conv"]["b"])


# ----------------------------------------------------------------------------
# Pure-JAX reference mirroring PyTorch semantics exactly (NCHW / OIHW).
# ----------------------------------------------------------------------------
def _reference_forward(e, params, eps=1e-5):
    def conv_bn_relu(x, w, b, g, be):
        y = lax.conv_general_dilated(
            x, w, window_strides=(1, 1), padding=((1, 1), (1, 1)),
            dimension_numbers=("NCHW", "OIHW", "NCHW"),
            precision=lax.Precision.HIGHEST)
        y = y + b[None, :, None, None]
        mean = jnp.mean(y, axis=(0, 2, 3), keepdims=True)
        var = jnp.mean(jnp.square(y - mean), axis=(0, 2, 3), keepdims=True)
        y = (y - mean) * lax.rsqrt(var + eps)
        y = y * g[None, :, None, None] + be[None, :, None, None]
        return jnp.maximum(y, 0.0)

    def up(x, p):
        x = jnp.repeat(jnp.repeat(x, 2, axis=2), 2, axis=3)
        return conv_bn_relu(x, p["w"], p["b"], p["g"], p["be"])

    def block(x, p):
        x = conv_bn_relu(x, p["w1"], p["b1"], p["g1"], p["be1"])
        x = conv_bn_relu(x, p["w2"], p["b2"], p["g2"], p["be2"])
        return x

    d5 = up(e[4], params["Up5"])
    d5 = jnp.concatenate([e[3], d5], axis=1)
    d5 = block(d5, params["Up_conv5"])
    d4 = up(d5, params["Up4"])
    d4 = jnp.concatenate([e[2], d4], axis=1)
    d4 = block(d4, params["Up_conv4"])
    d3 = up(d4, params["Up3"])
    d3 = jnp.concatenate([e[1], d3], axis=1)
    d3 = block(d3, params["Up_conv3"])
    d2 = up(d3, params["Up2"])
    d2 = jnp.concatenate([e[0], d2], axis=1)
    d2 = block(d2, params["Up_conv2"])
    d1 = lax.conv_general_dilated(
        d2, params["Conv"]["w"], window_strides=(1, 1), padding=((0, 0), (0, 0)),
        dimension_numbers=("NCHW", "OIHW", "NCHW"),
        precision=lax.Precision.HIGHEST)
    d1 = d1 + params["Conv"]["b"][None, :, None, None]
    return jax.nn.softmax(d1, axis=1)


# ----------------------------------------------------------------------------
# Parameter construction (PyTorch-style layouts: conv OIHW, BN vectors).
# ----------------------------------------------------------------------------
def _conv_bn_params(key, cin, cout):
    kw, kb, kg, kbe = jax.random.split(key, 4)
    std = 1.0 / float(np.sqrt(9.0 * cin))
    return {
        "w": std * jax.random.normal(kw, (cout, cin, 3, 3), jnp.float32),
        "b": 0.1 * jax.random.normal(kb, (cout,), jnp.float32),
        "g": 1.0 + 0.1 * jax.random.normal(kg, (cout,), jnp.float32),
        "be": 0.1 * jax.random.normal(kbe, (cout,), jnp.float32),
    }


def _conv_block_params(key, cin, cout):
    k1, k2 = jax.random.split(key)
    p1 = _conv_bn_params(k1, cin, cout)
    p2 = _conv_bn_params(k2, cout, cout)
    return {"w1": p1["w"], "b1": p1["b"], "g1": p1["g"], "be1": p1["be"],
            "w2": p2["w"], "b2": p2["b"], "g2": p2["g"], "be2": p2["be"]}


if __name__ == "__main__":
    # Pin down the pltpu.roll shift convention outside any tracing.
    _roll_is_np_roll()

    # Small deterministic decoder: n1=8 -> filters [8, 16, 32, 64, 128], out_ch=4,
    # deepest encoder map 4x4, shallowest 64x64, batch 2.
    n1, out_ch, N, base = 8, 4, 2, 4
    filters = [n1, n1 * 2, n1 * 4, n1 * 8, n1 * 16]

    key = jax.random.PRNGKey(0)
    keys = jax.random.split(key, 16)

    # Synthetic encoder feature maps e[0..4] (NCHW) as UNet2DDecoder expects.
    e = []
    for lvl in range(5):
        spatial = base * (2 ** (4 - lvl))
        e.append(jax.random.normal(
            keys[lvl], (N, filters[lvl], spatial, spatial), jnp.float32))

    params = {
        "Up5": _conv_bn_params(keys[5], filters[4], filters[3]),
        "Up_conv5": _conv_block_params(keys[6], filters[4], filters[3]),
        "Up4": _conv_bn_params(keys[7], filters[3], filters[2]),
        "Up_conv4": _conv_block_params(keys[8], filters[3], filters[2]),
        "Up3": _conv_bn_params(keys[9], filters[2], filters[1]),
        "Up_conv3": _conv_block_params(keys[10], filters[2], filters[1]),
        "Up2": _conv_bn_params(keys[11], filters[1], filters[0]),
        "Up_conv2": _conv_block_params(keys[12], filters[1], filters[0]),
        "Conv": {
            "w": (1.0 / float(np.sqrt(filters[0]))) *
                 jax.random.normal(keys[13], (out_ch, filters[0], 1, 1), jnp.float32),
            "b": 0.1 * jax.random.normal(keys[14], (out_ch,), jnp.float32),
        },
    }

    out = jax.block_until_ready(jax.jit(unet2d_decoder_forward)(e, params))
    ref = jax.block_until_ready(jax.jit(_reference_forward)(e, params))

    np.testing.assert_allclose(np.asarray(out), np.asarray(ref),
                               rtol=2e-3, atol=2e-3)
    assert np.allclose(np.asarray(out).sum(axis=1), 1.0, atol=1e-4)

    print("KERNEL_OK")
</pallas_src>

<mosaic_0001>
module attributes {stable_mosaic.version = 11 : i64} {
  func.func @k(%arg0: memref<8x128xf32, #tpu.memory_space<vmem>>, %arg1: memref<8x128xf32, #tpu.memory_space<vmem>>) attributes {dimension_semantics = [], scalar_prefetch = 0 : i64, scratch_operands = 0 : i64, tpu.core_type = #tpu.core_type<tc>} {
    %c0 = arith.constant 0 : index
    %c0_0 = arith.constant 0 : index
    %0 = vector.load %arg0[%c0, %c0_0] : memref<8x128xf32, #tpu.memory_space<vmem>>, vector<8x128xf32>
    %c1_i32 = arith.constant 1 : i32
    %1 = tpu.dynamic_rotate %0 by %c1_i32 dim 1 : vector<8x128xf32>, i32 -> vector<8x128xf32>
    %c0_1 = arith.constant 0 : index
    %c0_2 = arith.constant 0 : index
    %2 = vector.load %arg1[%c0_1, %c0_2] : memref<8x128xf32, #tpu.memory_space<vmem>>, vector<8x128xf32>
    tpu.vector_store %arg1[%c0_1, %c0_2], %1 {strides = array<i32>} : memref<8x128xf32, #tpu.memory_space<vmem>>, vector<8x128xf32>,
    return
  }
}

</mosaic_0001>

<llo_original>
// kernel: tpu_custom_call.1
$region0: #{tpu_custom_call.1}
  #allocation0 [shape = 'u32[]', space=smem, size = 0x4, offset = 0x4, fixed_abs, tag = 'smem constant byte address 0x4 - core index']
  #allocation1 [shape = 'u32[144,128]{1,0:T(1,128)}', space=vmem, size = 0x12000, scoped, tag = 'internal scratch']
  %s0 = inlined_call_operand.hbm [shape: f32[8,128], index: 0, kind: input, shape index: {}]
  %s1 = inlined_call_operand.hbm [shape: f32[8,128], index: 1, kind: output, shape index: {}]
  %s2 = sld [smem:[#allocation0]]
  $region18: #{tpu_custom_call.1} parent=0
    _
  %s4 = ssub.s32 1, %s2
  %s5 = scalar_select 0, %s4, %s2
  $region1: #{tpu_custom_call.1} parent=0
    #allocation2 [shape = 'u8[4096]{0}', space=vmem, size = 0x1000, scoped, tag = 'input window, operand 0, single buffered']
    #allocation3 [shape = 's32[1]{0}', space=sflag, size = 0x4, scoped, tag = 'scoped memory for tpu_custom_call.1']
    #allocation4 [shape = 's32[1]{0}', space=sflag, size = 0x4, scoped, tag = 'scoped memory for tpu_custom_call.1']
    #allocation5 [shape = 'u8[4096]{0}', space=vmem, size = 0x1000, scoped, tag = 'output window, operand 0, single buffered']
    %6 = vsyncpa [#allocation3], 0
    %7 = vsyncpa [#allocation4], 0
    // Predicated region
    $region2: #{tpu_custom_call.1} parent=1 // pred_check
      _
    $region3: #{tpu_custom_call.1} parent=1 // pred_check_branch
      %9 = sbr.rel (0) target = $region5
    $region4: #{tpu_custom_call.1} parent=1 // pred_region
      %s11 = ssub.s32 128, 128
      %12 = vsyncadd [#allocation3], %s11
      %s14 = sshll.u32 [#allocation2], 4
      %s15 = int_to_ptr.vmem [resolvable:$true] %s14
      %17 = dma.hbm_to_vmem [thread:$0]  %s0, 128, %s15, [#allocation3]
    $region5: #{tpu_custom_call.1} parent=1 // pred_fallthru
      _
    // Predicated region
    $region6: #{tpu_custom_call.1} parent=1 // pred_check
      _
    $region7: #{tpu_custom_call.1} parent=1 // pred_check_branch
      %19 = sbr.rel (0) target = $region9
    $region8: #{tpu_custom_call.1} parent=1 // pred_region
      %20 = dma.done [#allocation3], 128
    $region9: #{tpu_custom_call.1} parent=1 // pred_fallthru
      _
    %v21 = vld [vmem:[#allocation2] sm:$0xff]
    %22 = vrot.lane.b32.xlu0 %v21, 1
    %v23 = vpop.permute.xlu0 %22
    %24 = vst [vmem:[#allocation5] sm:$0xff] %v23
    // Predicated region
    $region10: #{tpu_custom_call.1} parent=1 // pred_check
      _
    $region11: #{tpu_custom_call.1} parent=1 // pred_check_branch
      %26 = sbr.rel (0) target = $region13
    $region12: #{tpu_custom_call.1} parent=1 // pred_region
      %s28 = ssub.s32 128, 128
      %29 = vsyncadd [#allocation4], %s28
      %s31 = sshll.u32 [#allocation5], 4
      %s32 = int_to_ptr.vmem [resolvable:$true] %s31
      %34 = dma.vmem_to_hbm [thread:$0]  %s32, 128, %s1, [#allocation4]
    $region13: #{tpu_custom_call.1} parent=1 // pred_fallthru
      _
    // Predicated region
    $region14: #{tpu_custom_call.1} parent=1 // pred_check
      _
    $region15: #{tpu_custom_call.1} parent=1 // pred_check_branch
      %36 = sbr.rel (0) target = $region17
    $region16: #{tpu_custom_call.1} parent=1 // pred_region
      %37 = dma.done [#allocation4], 128
    $region17: #{tpu_custom_call.1} parent=1 // pred_fallthru
      _
    %38 = vsyncpa [#allocation3], 1
    %39 = vsyncpa [#allocation4], 1

</llo_original>
